<compile_context>
chip_gen: v7x
topology: tpu7x:2x2x1
jax: 0.10.0
libtpu: 0.0.40
codegen_flags: <defaults>
</compile_context>

<pallas_src>
import jax
import jax.numpy as jnp
from jax.experimental import pallas as pl
from jax.experimental.pallas import tpu as pltpu

_LANE = 128
_MAX_CHUNKS = 64  # caps the statically unrolled per-tile chunk loop (<= 8192 lanes)


def _chip_knobs():
    """Returns (target_x_bytes, vmem_cap_bytes, dual_tc)."""
    kind = ""
    try:
        kind = jax.devices()[0].device_kind.lower()
    except Exception:
        pass
    single_tc = any(t in kind for t in ("v5 lite", "v5e", "v5litepod", "v6 lite", "v6e", "v6"))
    if single_tc:
        # v5e / v6e: 128 MiB physical VMEM, one TensorCore per chip.
        return 8 << 20, 64 << 20, False
    # v7x / unknown: 64 MiB physical VMEM, two TensorCores -> conservative knobs.
    return 4 << 20, 32 << 20, True


def _pick_hw_tile(C, HW, elem_bytes, target):
    """Lane-dim (flattened spatial) tile of the x block."""
    max_tile = _MAX_CHUNKS * _LANE
    if HW <= _LANE:
        return HW                                   # single tiny full-extent block
    if HW % _LANE == 0 and HW <= max_tile and C * HW * elem_bytes <= target:
        return HW                                   # whole image per block, no mask
    # Lane-aligned tile, never larger than HW (keeps the proven partial-block path).
    t = min(target // max(C * elem_bytes, 1), max_tile, HW)
    t = max(_LANE, (t // _LANE) * _LANE)
    # Prefer an exact divisor of HW (eliminates the mask path entirely) as long as
    # it stays within 2x of the target tile.
    if HW % _LANE == 0:
        for cand in range(t, _LANE - 1, -_LANE):
            if HW % cand == 0:
                if 2 * cand >= t:
                    return int(cand)
                break
    return int(t)


def _pick_b_tile(B, C, hw_tile, elem_bytes, target, keep_parallel):
    """Largest divisor of B whose x block stays near the target buffer size.
    On dual-TC chips keep >=2 entries on the parallel batch grid axis."""
    best = 1
    for cand in range(1, B + 1):
        if B % cand:
            continue
        if cand * C * hw_tile * elem_bytes > target:
            break
        if keep_parallel and B > 1 and B // cand < 2:
            break
        best = cand
    return best


def _make_kernel(b_tile, C, hw_tile, hw_total, n_hw):
    acc_w = min(_LANE, hw_tile)
    bounds = [(lo, min(lo + acc_w, hw_tile)) for lo in range(0, hw_tile, acc_w)]
    rem = hw_total - (n_hw - 1) * hw_tile          # valid lanes on the last HW tile
    needs_mask = rem != hw_tile

    # Chunks valid on every tile vs. chunks that straddle / exceed the tail.
    full = [(lo, hi) for lo, hi in bounds if (not needs_mask) or hi <= rem]
    tail = [(lo, hi) for lo, hi in bounds if needs_mask and hi > rem]

    def kernel(x_ref, w1t_ref, w2t_ref, o_ref, sum_acc, max_acc):
        hw_i = pl.program_id(1)
        is_last = hw_i == pl.num_programs(1) - 1

        # --- init accumulators on the first HW tile of this batch block -------
        @pl.when(hw_i == 0)
        def _():
            sum_acc[...] = jnp.zeros_like(sum_acc)
            max_acc[...] = jnp.full_like(max_acc, -jnp.inf)

        def fold(lo, hi, lane_valid=None):
            # One <=128-lane chunk: static slice (view), cast, optional mask, and
            # fold directly into the scratch refs (keeps value live-ranges short).
            w = hi - lo
            chunk = x_ref[:, :, lo:hi].astype(jnp.float32)
            if lane_valid is None:
                c_sum = c_max = chunk
            else:
                c_sum = jnp.where(lane_valid, chunk, 0.0)
                c_max = jnp.where(lane_valid, chunk, -jnp.inf)
            if w == acc_w:
                sum_acc[...] += c_sum
                max_acc[...] = jnp.maximum(max_acc[...], c_max)
            else:
                sum_acc[:, :, :w] += c_sum
                max_acc[:, :, :w] = jnp.maximum(max_acc[:, :, :w], c_max)

        # --- stage 1: elementwise (VPU-only) accumulation, hidden under DMA ---
        for lo, hi in full:                 # valid on every HW tile: no masking
            fold(lo, hi)

        if tail:
            @pl.when(jnp.logical_not(is_last))
            def _():                        # non-last tiles: tail chunks fully valid
                for lo, hi in tail:
                    fold(lo, hi)

            @pl.when(is_last)
            def _():                        # last tile: mask straddler, skip the rest
                for lo, hi in tail:
                    if lo >= rem:
                        continue            # entirely past H*W: contributes nothing
                    lane = jax.lax.broadcasted_iota(jnp.int32, (b_tile, C, hi - lo), 2)
                    fold(lo, hi, lane_valid=lane < (rem - lo))

        # --- finalize: one cross-lane reduce + tiny lane-dense shared MLP -----
        @pl.when(is_last)
        def _():
            avg = jnp.sum(sum_acc[...], axis=-1) * jnp.float32(1.0 / hw_total)  # (b_tile, C)
            mx = jnp.max(max_acc[...], axis=-1)                                 # (b_tile, C)
            pooled = jnp.concatenate([avg, mx], axis=0)                         # (2*b_tile, C)
            h = jnp.dot(pooled, w1t_ref[...], preferred_element_type=jnp.float32)
            h = jnp.maximum(h, 0.0)
            o = jnp.dot(h, w2t_ref[...], preferred_element_type=jnp.float32)
            out = jnp.maximum(o[:b_tile] + o[b_tile:], 0.0)                     # (b_tile, C)
            o_ref[0] = out.astype(o_ref.dtype)

    return kernel, acc_w


def channel_attention(x, w1, w2, *, hw_tile=None, b_tile=None):
    """x: [B, C, H, W]; w1: [C//r, C]; w2: [C, C//r] (1x1 conv weights squeezed).
    Returns [B, C, 1, 1]."""
    B, C, H, W = x.shape
    Cr = w1.shape[0]
    assert w1.shape == (Cr, C) and w2.shape == (C, Cr)
    HW = H * W
    itemsize = x.dtype.itemsize

    target_x_bytes, vmem_cap, dual_tc = _chip_knobs()

    if hw_tile is None:
        hw_tile = _pick_hw_tile(C, HW, itemsize, target_x_bytes)
    else:
        hw_tile = int(hw_tile)
        if hw_tile >= HW:
            hw_tile = HW                     # full-extent block: no lane constraint
        elif hw_tile % _LANE:
            raise ValueError(
                f"hw_tile={hw_tile} must be a multiple of {_LANE} or >= H*W={HW}")
    if b_tile is None:
        b_tile = _pick_b_tile(B, C, hw_tile, itemsize, target_x_bytes, dual_tc)
    assert B % b_tile == 0, "batch tile must divide batch"

    n_hw = pl.cdiv(HW, hw_tile)
    x_flat = x.reshape(B, C, HW)
    # Transposed weights so both matmuls are lane-dense (K on lanes); free on host.
    w1t = w1.T  # (C, Cr)
    w2t = w2.T  # (Cr, C)

    kernel, acc_w = _make_kernel(b_tile, C, hw_tile, HW, n_hw)

    # Honest resident-VMEM estimate: double-buffered x / weight / output blocks,
    # both f32 accumulators, plus headroom for a few in-flight f32 chunk temps.
    wbytes = w1.dtype.itemsize
    est = (2 * b_tile * C * hw_tile * itemsize        # x (double buffered)
           + 2 * 2 * C * Cr * wbytes                  # w1t + w2t (double buffered)
           + 2 * b_tile * C * itemsize                # output block
           + 2 * b_tile * C * acc_w * 4               # sum + max accumulators
           + 4 * b_tile * C * acc_w * 4)              # chunk-temporary headroom
    vmem_limit = int(min(max(int(est * 1.5), 16 << 20), vmem_cap))

    out = pl.pallas_call(
        kernel,
        out_shape=jax.ShapeDtypeStruct((B // b_tile, b_tile, C), x.dtype),
        grid_spec=pltpu.PrefetchScalarGridSpec(
            num_scalar_prefetch=0,
            grid=(B // b_tile, n_hw),
            in_specs=[
                pl.BlockSpec((b_tile, C, hw_tile), lambda b, h: (b, 0, h)),
                # Grid-invariant weights. (Single buffering via pl.Buffered(1)
                # would save 2*C*Cr*bytes of VMEM but is skipped for portability.)
                pl.BlockSpec((C, Cr), lambda b, h: (0, 0)),
                pl.BlockSpec((Cr, C), lambda b, h: (0, 0)),
            ],
            out_specs=pl.BlockSpec((1, b_tile, C), lambda b, h: (b, 0, 0)),
            scratch_shapes=[
                pltpu.VMEM((b_tile, C, acc_w), jnp.float32),  # running sum
                pltpu.VMEM((b_tile, C, acc_w), jnp.float32),  # running max
            ],
        ),
        compiler_params=pltpu.CompilerParams(
            dimension_semantics=("parallel", "arbitrary"),
            vmem_limit_bytes=vmem_limit,
        ),
    )(x_flat, w1t, w2t)

    return out.reshape(B, C, 1, 1)


def _reference(x, w1, w2):
    # Pure-JAX reference mirroring the PyTorch forward (sigmoid is unused there).
    avg = jnp.mean(x, axis=(2, 3))  # (B, C)
    mx = jnp.max(x, axis=(2, 3))    # (B, C)

    def mlp(p):
        h = jnp.maximum(p @ w1.T, 0.0)
        return h @ w2.T

    out = jnp.maximum(mlp(avg) + mlp(mx), 0.0)
    return out[:, :, None, None]


if __name__ == "__main__":
    # Small shapes consistent with the module (in_planes=C, ratio=4).
    B, C, ratio = 2, 32, 4
    Cr = C // ratio

    key = jax.random.PRNGKey(0)
    kx1, kx2, kx3, k1, k2 = jax.random.split(key, 5)

    w1 = jax.random.normal(k1, (Cr, C), dtype=jnp.float32) * 0.1
    w2 = jax.random.normal(k2, (C, Cr), dtype=jnp.float32) * 0.1

    # 1) Default path: HW=256 (lane aligned) -> whole image per block, no masking.
    x1 = jax.random.normal(kx1, (B, C, 16, 16), dtype=jnp.float32)
    y1 = jax.block_until_ready(channel_attention(x1, w1, w2))
    r1 = _reference(x1, w1, w2)
    assert y1.shape == (B, C, 1, 1)
    assert jnp.allclose(y1, r1, atol=1e-4, rtol=1e-4), "mismatch (single-tile path)"

    # 2) Tiled + masked path: hw_tile=128 on HW=144 -> 2 HW tiles, partial last
    #    tile exercising the pl.when mask path and accumulator init/finalize.
    x2 = jax.random.normal(kx2, (B, C, 12, 12), dtype=jnp.float32)
    y2 = jax.block_until_ready(channel_attention(x2, w1, w2, hw_tile=128))
    r2 = _reference(x2, w1, w2)
    assert jnp.allclose(y2, r2, atol=1e-4, rtol=1e-4), "mismatch (tiled/masked path)"

    # 3) Multi-tile masked path: hw_tile=128 on HW=400 -> 4 HW tiles, 16-lane tail.
    x3 = jax.random.normal(kx3, (B, C, 20, 20), dtype=jnp.float32)
    y3 = jax.block_until_ready(channel_attention(x3, w1, w2, hw_tile=128))
    r3 = _reference(x3, w1, w2)
    assert jnp.allclose(y3, r3, atol=1e-4, rtol=1e-4), "mismatch (multi-tile path)"

    print("KERNEL_OK")
</pallas_src>

<mosaic_0001>
module attributes {stable_mosaic.version = 11 : i64} {
  func.func @kernel(%arg0: i32, %arg1: i32, %arg2: memref<1x32x256xf32, #tpu.memory_space<vmem>>, %arg3: memref<32x8xf32, #tpu.memory_space<vmem>>, %arg4: memref<8x32xf32, #tpu.memory_space<vmem>>, %arg5: memref<1x1x32xf32, #tpu.memory_space<vmem>>, %arg6: memref<1x32x128xf32, #tpu.memory_space<vmem>>, %arg7: memref<1x32x128xf32, #tpu.memory_space<vmem>>) attributes {dimension_semantics = [#tpu.dimension_semantics<parallel>, #tpu.dimension_semantics<arbitrary>], iteration_bounds = array<i64: 2, 1>, scalar_prefetch = 0 : i64, scratch_operands = 2 : i64, tpu.core_type = #tpu.core_type<tc>, window_params = [{transform_indices = @transform_0, window_bounds = array<i64: 1, 32, 256>}, {pipeline_mode = #tpu.pipeline_mode<synchronous>, transform_indices = @transform_1, window_bounds = array<i64: 32, 8>}, {pipeline_mode = #tpu.pipeline_mode<synchronous>, transform_indices = @transform_2, window_bounds = array<i64: 8, 32>}, {transform_indices = @transform_3, window_bounds = array<i64: 1, 1, 32>}]} {
    %c0_i32 = arith.constant 0 : i32
    %0 = arith.cmpi eq, %arg1, %c0_i32 : i32
    %c0_i32_0 = arith.constant 0 : i32
    %1 = arith.cmpi eq, %arg1, %c0_i32_0 : i32
    %2 = arith.extui %1 : i1 to i32
    %c0_i32_1 = arith.constant 0 : i32
    %3 = arith.cmpi ne, %2, %c0_i32_1 : i32
    scf.if %3 {
      %cst = arith.constant 0.000000e+00 : f32
      %20 = vector.broadcast %cst : f32 to vector<1x32x128xf32>
      %c0_31 = arith.constant 0 : index
      %c0_32 = arith.constant 0 : index
      %c0_33 = arith.constant 0 : index
      %21 = vector.load %arg6[%c0_31, %c0_32, %c0_33] : memref<1x32x128xf32, #tpu.memory_space<vmem>>, vector<1x32x128xf32>
      tpu.vector_store %arg6[%c0_31, %c0_32, %c0_33], %20 {strides = array<i32>} : memref<1x32x128xf32, #tpu.memory_space<vmem>>, vector<1x32x128xf32>,
      %cst_34 = arith.constant 0xFF800000 : f32
      %22 = vector.broadcast %cst_34 : f32 to vector<1x32x128xf32>
      %c0_35 = arith.constant 0 : index
      %c0_36 = arith.constant 0 : index
      %c0_37 = arith.constant 0 : index
      %23 = vector.load %arg7[%c0_35, %c0_36, %c0_37] : memref<1x32x128xf32, #tpu.memory_space<vmem>>, vector<1x32x128xf32>
      tpu.vector_store %arg7[%c0_35, %c0_36, %c0_37], %22 {strides = array<i32>} : memref<1x32x128xf32, #tpu.memory_space<vmem>>, vector<1x32x128xf32>,
    } else {
    }
    %c0 = arith.constant 0 : index
    %c0_2 = arith.constant 0 : index
    %c0_3 = arith.constant 0 : index
    %4 = vector.load %arg2[%c0, %c0_2, %c0_3] : memref<1x32x256xf32, #tpu.memory_space<vmem>>, vector<1x32x128xf32>
    %c0_4 = arith.constant 0 : index
    %c0_5 = arith.constant 0 : index
    %c0_6 = arith.constant 0 : index
    %5 = vector.load %arg6[%c0_4, %c0_5, %c0_6] : memref<1x32x128xf32, #tpu.memory_space<vmem>>, vector<1x32x128xf32>
    %6 = arith.addf %5, %4 : vector<1x32x128xf32>
    %c0_7 = arith.constant 0 : index
    %c0_8 = arith.constant 0 : index
    %c0_9 = arith.constant 0 : index
    %7 = vector.load %arg6[%c0_7, %c0_8, %c0_9] : memref<1x32x128xf32, #tpu.memory_space<vmem>>, vector<1x32x128xf32>
    tpu.vector_store %arg6[%c0_7, %c0_8, %c0_9], %6 {strides = array<i32>} : memref<1x32x128xf32, #tpu.memory_space<vmem>>, vector<1x32x128xf32>,
    %c0_10 = arith.constant 0 : index
    %c0_11 = arith.constant 0 : index
    %c0_12 = arith.constant 0 : index
    %8 = vector.load %arg7[%c0_10, %c0_11, %c0_12] : memref<1x32x128xf32, #tpu.memory_space<vmem>>, vector<1x32x128xf32>
    %9 = arith.maximumf %8, %4 : vector<1x32x128xf32>
    %c0_13 = arith.constant 0 : index
    %c0_14 = arith.constant 0 : index
    %c0_15 = arith.constant 0 : index
    %10 = vector.load %arg7[%c0_13, %c0_14, %c0_15] : memref<1x32x128xf32, #tpu.memory_space<vmem>>, vector<1x32x128xf32>
    tpu.vector_store %arg7[%c0_13, %c0_14, %c0_15], %9 {strides = array<i32>} : memref<1x32x128xf32, #tpu.memory_space<vmem>>, vector<1x32x128xf32>,
    %c0_16 = arith.constant 0 : index
    %c0_17 = arith.constant 0 : index
    %c128 = arith.constant 128 : index
    %11 = vector.load %arg2[%c0_16, %c0_17, %c128] : memref<1x32x256xf32, #tpu.memory_space<vmem>>, vector<1x32x128xf32>
    %c0_18 = arith.constant 0 : index
    %c0_19 = arith.constant 0 : index
    %c0_20 = arith.constant 0 : index
    %12 = vector.load %arg6[%c0_18, %c0_19, %c0_20] : memref<1x32x128xf32, #tpu.memory_space<vmem>>, vector<1x32x128xf32>
    %13 = arith.addf %12, %11 : vector<1x32x128xf32>
    %c0_21 = arith.constant 0 : index
    %c0_22 = arith.constant 0 : index
    %c0_23 = arith.constant 0 : index
    %14 = vector.load %arg6[%c0_21, %c0_22, %c0_23] : memref<1x32x128xf32, #tpu.memory_space<vmem>>, vector<1x32x128xf32>
    tpu.vector_store %arg6[%c0_21, %c0_22, %c0_23], %13 {strides = array<i32>} : memref<1x32x128xf32, #tpu.memory_space<vmem>>, vector<1x32x128xf32>,
    %c0_24 = arith.constant 0 : index
    %c0_25 = arith.constant 0 : index
    %c0_26 = arith.constant 0 : index
    %15 = vector.load %arg7[%c0_24, %c0_25, %c0_26] : memref<1x32x128xf32, #tpu.memory_space<vmem>>, vector<1x32x128xf32>
    %16 = arith.maximumf %15, %11 : vector<1x32x128xf32>
    %c0_27 = arith.constant 0 : index
    %c0_28 = arith.constant 0 : index
    %c0_29 = arith.constant 0 : index
    %17 = vector.load %arg7[%c0_27, %c0_28, %c0_29] : memref<1x32x128xf32, #tpu.memory_space<vmem>>, vector<1x32x128xf32>
    tpu.vector_store %arg7[%c0_27, %c0_28, %c0_29], %16 {strides = array<i32>} : memref<1x32x128xf32, #tpu.memory_space<vmem>>, vector<1x32x128xf32>,
    %18 = arith.extui %0 : i1 to i32
    %c0_i32_30 = arith.constant 0 : i32
    %19 = arith.cmpi ne, %18, %c0_i32_30 : i32
    scf.if %19 {
      %c0_31 = arith.constant 0 : index
      %c0_32 = arith.constant 0 : index
      %c0_33 = arith.constant 0 : index
      %20 = vector.load %arg6[%c0_31, %c0_32, %c0_33] : memref<1x32x128xf32, #tpu.memory_space<vmem>>, vector<1x32x128xf32>
      %cst = arith.constant dense<0.000000e+00> : vector<1x32xf32>
      %21 = vector.multi_reduction <add>, %20, %cst [2] : vector<1x32x128xf32> to vector<1x32xf32>
      %cst_34 = arith.constant 3.906250e-03 : f32
      %22 = vector.broadcast %cst_34 : f32 to vector<1x32xf32>
      %23 = arith.mulf %21, %22 : vector<1x32xf32>
      %c0_35 = arith.constant 0 : index
      %c0_36 = arith.constant 0 : index
      %c0_37 = arith.constant 0 : index
      %24 = vector.load %arg7[%c0_35, %c0_36, %c0_37] : memref<1x32x128xf32, #tpu.memory_space<vmem>>, vector<1x32x128xf32>
      %cst_38 = arith.constant dense<0xFF800000> : vector<1x32xf32>
      %25 = vector.multi_reduction <maximumf>, %24, %cst_38 [2] : vector<1x32x128xf32> to vector<1x32xf32>
      %26 = tpu.concatenate %23, %25 in 0 : vector<1x32xf32>, vector<1x32xf32> -> vector<2x32xf32>
      %c0_39 = arith.constant 0 : index
      %c0_40 = arith.constant 0 : index
      %27 = vector.load %arg3[%c0_39, %c0_40] : memref<32x8xf32, #tpu.memory_space<vmem>>, vector<32x8xf32>
      %cst_41 = arith.constant dense<0.000000e+00> : vector<2x8xf32>
      %28 = tpu.matmul %26, %27, %cst_41 {dimension_numbers = #tpu.dot_dimension_numbers<[1], [0], [0], [1], [0, 0, 1, 1], [], []>} : vector<2x32xf32>, vector<32x8xf32>, vector<2x8xf32> -> vector<2x8xf32>
      %cst_42 = arith.constant 0.000000e+00 : f32
      %29 = vector.broadcast %cst_42 : f32 to vector<2x8xf32>
      %30 = arith.maximumf %28, %29 : vector<2x8xf32>
      %c0_43 = arith.constant 0 : index
      %c0_44 = arith.constant 0 : index
      %31 = vector.load %arg4[%c0_43, %c0_44] : memref<8x32xf32, #tpu.memory_space<vmem>>, vector<8x32xf32>
      %cst_45 = arith.constant dense<0.000000e+00> : vector<2x32xf32>
      %32 = tpu.matmul %30, %31, %cst_45 {dimension_numbers = #tpu.dot_dimension_numbers<[1], [0], [0], [1], [0, 0, 1, 1], [], []>} : vector<2x8xf32>, vector<8x32xf32>, vector<2x32xf32> -> vector<2x32xf32>
      %33 = vector.extract_strided_slice %32 {offsets = [0, 0], sizes = [1, 32], strides = [1, 1]} : vector<2x32xf32> to vector<1x32xf32>
      %34 = vector.extract_strided_slice %32 {offsets = [1, 0], sizes = [1, 32], strides = [1, 1]} : vector<2x32xf32> to vector<1x32xf32>
      %35 = arith.addf %33, %34 : vector<1x32xf32>
      %cst_46 = arith.constant 0.000000e+00 : f32
      %36 = vector.broadcast %cst_46 : f32 to vector<1x32xf32>
      %37 = arith.maximumf %35, %36 : vector<1x32xf32>
      %c0_47 = arith.constant 0 : index
      %c0_48 = arith.constant 0 : index
      %c0_49 = arith.constant 0 : index
      %38 = vector.load %arg5[%c0_47, %c0_48, %c0_49] : memref<1x1x32xf32, #tpu.memory_space<vmem>>, vector<1x1x32xf32>
      %39 = vector.shape_cast %38 : vector<1x1x32xf32> to vector<1x32xf32>
      %40 = vector.shape_cast %37 : vector<1x32xf32> to vector<1x1x32xf32>
      tpu.vector_store %arg5[%c0_47, %c0_48, %c0_49], %40 {strides = array<i32>} : memref<1x1x32xf32, #tpu.memory_space<vmem>>, vector<1x1x32xf32>,
    } else {
    }
    return
  }
  func.func @transform_0(%arg0: i32, %arg1: i32) -> (i32, i32, i32) {
    %c0_i32 = arith.constant 0 : i32
    %c0_i32_0 = arith.constant 0 : i32
    return %arg0, %c0_i32, %arg1 : i32, i32, i32
  }
  func.func @transform_1(%arg0: i32, %arg1: i32) -> (i32, i32) {
    %c0_i32 = arith.constant 0 : i32
    %c0_i32_0 = arith.constant 0 : i32
    %c0_i32_1 = arith.constant 0 : i32
    return %c0_i32, %c0_i32_0 : i32, i32
  }
  func.func @transform_2(%arg0: i32, %arg1: i32) -> (i32, i32) {
    %c0_i32 = arith.constant 0 : i32
    %c0_i32_0 = arith.constant 0 : i32
    %c0_i32_1 = arith.constant 0 : i32
    return %c0_i32, %c0_i32_0 : i32, i32
  }
  func.func @transform_3(%arg0: i32, %arg1: i32) -> (i32, i32, i32) {
    %c0_i32 = arith.constant 0 : i32
    %c0_i32_0 = arith.constant 0 : i32
    %c0_i32_1 = arith.constant 0 : i32
    return %arg0, %c0_i32, %c0_i32_0 : i32, i32, i32
  }
}

</mosaic_0001>

<llo_original>
// kernel: tpu_custom_call.1
$region0: #{tpu_custom_call.1}
  #allocation0 [shape = 'u32[]', space=smem, size = 0x4, offset = 0x4, fixed_abs, tag = 'smem constant byte address 0x4 - core index']
  #allocation1 [shape = 'u32[144,128]{1,0:T(1,128)}', space=vmem, size = 0x12000, scoped, tag = 'internal scratch']
  #allocation2 [shape = 'f32[1,32,128]{2,1,0:T(8,128)}', space=vmem, size = 0x4000, scoped, tag = 'scratch operand']
  #allocation3 [shape = 'f32[1,32,128]{2,1,0:T(8,128)}', space=vmem, size = 0x4000, scoped, tag = 'scratch operand']
  %s0 = inlined_call_operand.hbm [shape: f32[2,32,256], index: 0, kind: input, shape index: {}]
  %s1 = inlined_call_operand.vmem [shape: f32[32,8], index: 1, kind: input, shape index: {}]
  %s2 = inlined_call_operand.vmem [shape: f32[8,32], index: 2, kind: input, shape index: {}]
  %s3 = inlined_call_operand.hbm [shape: f32[2,1,32], index: 3, kind: output, shape index: {}]
  %s4 = sld [smem:[#allocation0]]
  $region57: #{tpu_custom_call.1} parent=0
    _
  %s6 = ssub.s32 1, %s4
  %s7 = scalar_select 0, %s6, %s4
  $region1: #{tpu_custom_call.1} parent=0
    #allocation4 [shape = 'u8[65536]{0}', space=vmem, size = 0x10000, scoped, tag = 'input window, operand 0']
    #allocation5 [shape = 's32[2]{0}', space=sflag, size = 0x8, scoped, tag = 'scoped memory for tpu_custom_call.1']
    #allocation6 [shape = 's32[2]{0}', space=sflag, size = 0x8, scoped, tag = 'scoped memory for tpu_custom_call.1']
    #allocation7 [shape = 'u8[1024]{0}', space=vmem, size = 0x400, scoped, tag = 'output window, operand 0']
    %8 = vsyncpa [#allocation5], 0
    %s9 = scalar_lea.sflag [#allocation5], 1
    %10 = vsyncpa %s9, 0
    %11 = vsyncpa [#allocation6], 0
    %s12 = scalar_lea.sflag [#allocation6], 1
    %13 = vsyncpa %s12, 0
    loop: start=0, step=1, limit=4
    $region2: #{tpu_custom_call.1} parent=1 // loop_pre_header
      _
    $region3: #{tpu_custom_call.1} parent=1 // loop_header
      %s15 = sphi 0, %s19
      %p16 = scmp.ge.s32.totalorder %s15, 4
      %s22 = sphi 0, %s34
      %s23 = sphi 0, %s30
      %s24 = sphi 0, %s22
      %s25 = sphi 0, %s23
      %s26 = sphi 0, %s24
      %s27 = sphi 0, %s25
      %s39 = sphi 0, %s41
      %s42 = sphi 0, %s39
      %s43 = sphi 0, %s42
      %s59 = sphi 0, %s43
      %s63 = sphi 0, %s63
      %s65 = sphi 0, %s63
      %s66 = sphi 0, %s65
      %s80 = sphi 0, %s66
      %s84 = sphi 0, %s84
      %s86 = sphi 0, %s84
      %s87 = sphi 0, %s86
      %s101 = sphi 0, %s87
      %s107 = sphi 0, %s109
      %s110 = sphi 0, %s107
      %s111 = sphi 0, %s110
      %s127 = sphi 0, %s111
    $region4: #{tpu_custom_call.1} parent=1 // loop_header_branch
      %18 = sbr.rel (%p16) target = $region8
    $region5: #{tpu_custom_call.1} parent=1 // loop_body
      %s20 = ssub.s32 %s15, 1
      %s21 = ssub.s32 %s15, 2
      %s28 = sadd.s32 1, %s23
      %p29 = scmp.ge.s32.totalorder %s28, 1
      %s30 = scalar_select %p29, 0, %s28
      %s31 = sadd.s32 1, %s22
      %s32 = scalar_select %p29, %s31, %s22
      %p33 = scmp.ge.s32.totalorder %s32, 2
      %s34 = scalar_select %p33, 0, %s32
      %s35 = ssub.s32 %s22, %s34
      %s36 = ssub.s32 %s23, %s30
      %s37 = sor.u32 %s35, %s36
      %p38 = scmp.eq.s32.totalorder %s37, 0
      %s40 = sadd.s32 %s39, 1
      %s41 = scalar_select %p38, %s39, %s40
      %p44 = pneg %p38
      %p45 = scmp.eq.s32.totalorder %s15, 1
      %p46 = por %p44, %p45
      %p47 = scmp.ne.s32.totalorder %s39, %s42
      %p48 = scmp.eq.s32.totalorder %s15, 0
      %p49 = por %p47, %p48
      %p50 = scmp.ne.s32.totalorder %s39, %s42
      %p51 = scmp.eq.s32.totalorder %s20, 1
      %p52 = por %p50, %p51
      %p53 = scmp.ne.s32.totalorder %s42, %s43
      %p54 = scmp.eq.s32.totalorder %s20, 0
      %p55 = por %p53, %p54
      %p56 = scmp.ne.s32.totalorder %s42, %s43
      %p57 = scmp.eq.s32.totalorder %s21, 1
      %p58 = por %p56, %p57
      %p60 = scmp.ne.s32.totalorder %s43, %s59
      %p61 = scmp.eq.s32.totalorder %s21, 0
      %p62 = por %p60, %p61
      %s64 = sadd.s32 %s63, 1
      %p67 = scmp.eq.s32.totalorder %s15, 1
      %p68 = scmp.ne.s32.totalorder %s63, %s65
      %p69 = scmp.eq.s32.totalorder %s15, 0
      %p70 = por %p68, %p69
      %p71 = scmp.ne.s32.totalorder %s63, %s65
      %p72 = scmp.eq.s32.totalorder %s20, 1
      %p73 = por %p71, %p72
      %p74 = scmp.ne.s32.totalorder %s65, %s66
      %p75 = scmp.eq.s32.totalorder %s20, 0
      %p76 = por %p74, %p75
      %p77 = scmp.ne.s32.totalorder %s65, %s66
      %p78 = scmp.eq.s32.totalorder %s21, 1
      %p79 = por %p77, %p78
      %p81 = scmp.ne.s32.totalorder %s66, %s80
      %p82 = scmp.eq.s32.totalorder %s21, 0
      %p83 = por %p81, %p82
      %s85 = sadd.s32 %s84, 1
      %p88 = scmp.eq.s32.totalorder %s15, 1
      %p89 = scmp.ne.s32.totalorder %s84, %s86
      %p90 = scmp.eq.s32.totalorder %s15, 0
      %p91 = por %p89, %p90
      %p92 = scmp.ne.s32.totalorder %s84, %s86
      %p93 = scmp.eq.s32.totalorder %s20, 1
      %p94 = por %p92, %p93
      %p95 = scmp.ne.s32.totalorder %s86, %s87
      %p96 = scmp.eq.s32.totalorder %s20, 0
      %p97 = por %p95, %p96
      %p98 = scmp.ne.s32.totalorder %s86, %s87
      %p99 = scmp.eq.s32.totalorder %s21, 1
      %p100 = por %p98, %p99
      %p102 = scmp.ne.s32.totalorder %s87, %s101
      %p103 = scmp.eq.s32.totalorder %s21, 0
      %p104 = por %p102, %p103
      %s105 = ssub.s32 %s22, %s34
      %p106 = scmp.eq.s32.totalorder %s105, 0
      %s108 = sadd.s32 %s107, 1
      %s109 = scalar_select %p106, %s107, %s108
      %p112 = pneg %p106
      %p113 = scmp.eq.s32.totalorder %s15, 1
      %p114 = por %p112, %p113
      %p115 = scmp.ne.s32.totalorder %s107, %s110
      %p116 = scmp.eq.s32.totalorder %s15, 0
      %p117 = por %p115, %p116
      %p118 = scmp.ne.s32.totalorder %s107, %s110
      %p119 = scmp.eq.s32.totalorder %s20, 1
      %p120 = por %p118, %p119
      %p121 = scmp.ne.s32.totalorder %s110, %s111
      %p122 = scmp.eq.s32.totalorder %s20, 0
      %p123 = por %p121, %p122
      %p124 = scmp.ne.s32.totalorder %s110, %s111
      %p125 = scmp.eq.s32.totalorder %s21, 1
      %p126 = por %p124, %p125
      %p128 = scmp.ne.s32.totalorder %s111, %s127
      %p129 = scmp.eq.s32.totalorder %s21, 0
      %p130 = por %p128, %p129
      %p131 = scmp.le.s32.totalorder 1, %s15
      %p132 = scmp.lt.s32.totalorder %s15, 3
      %p133 = pnand %p131, %p132
      %p134 = pneg %p133
      // Predicated region
      $region9: #{tpu_custom_call.1} parent=5 // pred_check
        _
      $region10: #{tpu_custom_call.1} parent=5 // pred_check_branch
        %136 = sbr.rel (%p133) target = $region12
      $region11: #{tpu_custom_call.1} parent=5 // pred_region
        %s137 = ssub.s32 %s15, 1
        // Predicated region
        $region13: #{tpu_custom_call.1} parent=11 // pred_check
          %p138 = pneg %p76
        $region14: #{tpu_custom_call.1} parent=11 // pred_check_branch
          %140 = sbr.rel (%p138) target = $region16
        $region15: #{tpu_custom_call.1} parent=11 // pred_region
          _
        $region16: #{tpu_custom_call.1} parent=11 // pred_fallthru
          _
        // Predicated region
        $region17: #{tpu_custom_call.1} parent=11 // pred_check
          %p141 = pneg %p97
        $region18: #{tpu_custom_call.1} parent=11 // pred_check_branch
          %143 = sbr.rel (%p141) target = $region20
        $region19: #{tpu_custom_call.1} parent=11 // pred_region
          _
        $region20: #{tpu_custom_call.1} parent=11 // pred_fallthru
          _
      $region12: #{tpu_custom_call.1} parent=5 // pred_fallthru
        _
      %p144 = scmp.lt.s32.totalorder %s15, 2
      // Predicated region
      $region21: #{tpu_custom_call.1} parent=5 // pred_check
        %p145 = pneg %p144
      $region22: #{tpu_custom_call.1} parent=5 // pred_check_branch
        %147 = sbr.rel (%p145) target = $region24
      $region23: #{tpu_custom_call.1} parent=5 // pred_region
        // Predicated region
        $region25: #{tpu_custom_call.1} parent=23 // pred_check
          %p148 = pneg %p49
        $region26: #{tpu_custom_call.1} parent=23 // pred_check_branch
          %150 = sbr.rel (%p148) target = $region28
        $region27: #{tpu_custom_call.1} parent=23 // pred_region
          %s151 = sand.u32 %s39, 1
          %s152 = scalar_lea.sflag [#allocation5], %s151
          %s153 = sand.u32 %s39, 1
          %s154 = smul.addr %s153, 64
          %s155 = scalar_lea.vmem [#allocation4], %s154
          %s156 = smul.u32 2, %s23
          %s158 = ssub.s32 1024, 1024
          %159 = vsyncadd %s152, %s158
          %s160 = smul.addr %s22, 8
          %s161 = sadd.s32 %s156, %s160
          %s162 = smul.addr %s161, 128
          %s163 = scalar_lea.hbm %s0, %s162
          %s164 = sshll.u32 %s155, 4
          %s165 = int_to_ptr.vmem [resolvable:$true] %s164
          %170 = dma.hbm_to_vmem [thread:$0]  %s163, 1024, %s165, %s152, 256, 256, 16
        $region28: #{tpu_custom_call.1} parent=23 // pred_fallthru
          _
      $region24: #{tpu_custom_call.1} parent=5 // pred_fallthru
        _
      %p171 = scmp.le.s32.totalorder 1, %s15
      %p172 = scmp.lt.s32.totalorder %s15, 3
      %p173 = pnand %p171, %p172
      %p174 = pneg %p173
      // Predicated region
      $region29: #{tpu_custom_call.1} parent=5 // pred_check
        _
      $region30: #{tpu_custom_call.1} parent=5 // pred_check_branch
        %176 = sbr.rel (%p173) target = $region32
      $region31: #{tpu_custom_call.1} parent=5 // pred_region
        %s177 = ssub.s32 %s15, 1
        %s178 = sand.u32 %s42, 1
        %s179 = scalar_lea.sflag [#allocation5], %s178
        %s180 = sand.u32 %s42, 1
        %s181 = smul.addr %s180, 64
        %s182 = scalar_lea.vmem [#allocation4], %s181
        // Predicated region
        $region33: #{tpu_custom_call.1} parent=31 // pred_check
          %p183 = pneg %p55
        $region34: #{tpu_custom_call.1} parent=31 // pred_check_branch
          %185 = sbr.rel (%p183) target = $region36
        $region35: #{tpu_custom_call.1} parent=31 // pred_region
          %186 = dma.done %s179, 1024
        $region36: #{tpu_custom_call.1} parent=31 // pred_fallthru
          _
        %s187 = sand.u32 %s42, 1
        %s188 = scalar_lea.sflag [#allocation5], %s187
        %s189 = sand.u32 %s42, 1
        %s190 = smul.addr %s189, 64
        %s191 = scalar_lea.vmem [#allocation4], %s190
        %p192 = pneg %p55
        %p193 = pneg %p52
        %p194 = pneg %p76
        %p195 = pneg %p73
        %p196 = pneg %p97
        %p197 = pneg %p94
        %p198 = pneg %p123
        %p199 = pneg %p120
        %s200 = sand.u32 %s110, 1
        %s201 = scalar_lea.sflag [#allocation6], %s200
        %s202 = sand.u32 %s110, 1
        %s203 = scalar_lea.vmem [#allocation7], %s202
        %s204 = smul.u32 2, %s25
        %p205 = scmp.eq.s32.totalorder %s25, 0
        // Predicated region
        $region37: #{tpu_custom_call.1} parent=31 // pred_check
          %p206 = pneg %p205
        $region38: #{tpu_custom_call.1} parent=31 // pred_check_branch
          %208 = sbr.rel (%p206) target = $region40
        $region39: #{tpu_custom_call.1} parent=31 // pred_region
          %209 = vst [vmem:[#allocation2] sm:$0xff] 0.0
          %210 = vst [vmem:[#allocation2 + $0x8] sm:$0xff] 0.0
          %211 = vst [vmem:[#allocation2 + $0x10] sm:$0xff] 0.0
          %212 = vst [vmem:[#allocation2 + $0x18] sm:$0xff] 0.0
          %213 = vst [vmem:[#allocation3] sm:$0xff] -inf
          %214 = vst [vmem:[#allocation3 + $0x8] sm:$0xff] -inf
          %215 = vst [vmem:[#allocation3 + $0x10] sm:$0xff] -inf
          %216 = vst [vmem:[#allocation3 + $0x18] sm:$0xff] -inf
        $region40: #{tpu_custom_call.1} parent=31 // pred_fallthru
          _
        %v217 = vld [vmem:[%s182] sm:$0xff]
        %v218 = vld [vmem:[%s182 + $0x10] sm:$0xff]
        %v219 = vld [vmem:[%s182 + $0x20] sm:$0xff]
        %v220 = vld [vmem:[%s182 + $0x30] sm:$0xff]
        %v221 = vld [vmem:[#allocation2] sm:$0xff]
        %v222 = vld [vmem:[#allocation2 + $0x8] sm:$0xff]
        %v223 = vld [vmem:[#allocation2 + $0x10] sm:$0xff]
        %v224 = vld [vmem:[#allocation2 + $0x18] sm:$0xff]
        %v225 = vadd.f32 %v221, %v217
        %v226 = vadd.f32 %v222, %v218
        %v227 = vadd.f32 %v223, %v219
        %v228 = vadd.f32 %v224, %v220
        %229 = vst [vmem:[#allocation2] sm:$0xff] %v225
        %230 = vst [vmem:[#allocation2 + $0x8] sm:$0xff] %v226
        %231 = vst [vmem:[#allocation2 + $0x10] sm:$0xff] %v227
        %232 = vst [vmem:[#allocation2 + $0x18] sm:$0xff] %v228
        %v233 = vld [vmem:[#allocation3] sm:$0xff]
        %v234 = vld [vmem:[#allocation3 + $0x8] sm:$0xff]
        %v235 = vld [vmem:[#allocation3 + $0x10] sm:$0xff]
        %v236 = vld [vmem:[#allocation3 + $0x18] sm:$0xff]
        %v237 = vmax.f32 %v233, %v217
        %v238 = vmax.f32 %v234, %v218
        %v239 = vmax.f32 %v235, %v219
        %v240 = vmax.f32 %v236, %v220
        %241 = vst [vmem:[#allocation3] sm:$0xff] %v237
        %242 = vst [vmem:[#allocation3 + $0x8] sm:$0xff] %v238
        %243 = vst [vmem:[#allocation3 + $0x10] sm:$0xff] %v239
        %244 = vst [vmem:[#allocation3 + $0x18] sm:$0xff] %v240
        %v245 = vld [vmem:[%s182 + $0x8] sm:$0xff]
        %v246 = vld [vmem:[%s182 + $0x18] sm:$0xff]
        %v247 = vld [vmem:[%s182 + $0x28] sm:$0xff]
        %v248 = vld [vmem:[%s182 + $0x38] sm:$0xff]
        %v249 = vld [vmem:[#allocation2] sm:$0xff]
        %v250 = vld [vmem:[#allocation2 + $0x8] sm:$0xff]
        %v251 = vld [vmem:[#allocation2 + $0x10] sm:$0xff]
        %v252 = vld [vmem:[#allocation2 + $0x18] sm:$0xff]
        %v253 = vadd.f32 %v249, %v245
        %v254 = vadd.f32 %v250, %v246
        %v255 = vadd.f32 %v251, %v247
        %v256 = vadd.f32 %v252, %v248
        %257 = vst [vmem:[#allocation2] sm:$0xff] %v253
        %258 = vst [vmem:[#allocation2 + $0x8] sm:$0xff] %v254
        %259 = vst [vmem:[#allocation2 + $0x10] sm:$0xff] %v255
        %260 = vst [vmem:[#allocation2 + $0x18] sm:$0xff] %v256
        %v261 = vld [vmem:[#allocation3] sm:$0xff]
        %v262 = vld [vmem:[#allocation3 + $0x8] sm:$0xff]
        %v263 = vld [vmem:[#allocation3 + $0x10] sm:$0xff]
        %v264 = vld [vmem:[#allocation3 + $0x18] sm:$0xff]
        %v265 = vmax.f32 %v261, %v245
        %v266 = vmax.f32 %v262, %v246
        %v267 = vmax.f32 %v263, %v247
        %v268 = vmax.f32 %v264, %v248
        %269 = vst [vmem:[#allocation3] sm:$0xff] %v265
        %270 = vst [vmem:[#allocation3 + $0x8] sm:$0xff] %v266
        %271 = vst [vmem:[#allocation3 + $0x10] sm:$0xff] %v267
        %272 = vst [vmem:[#allocation3 + $0x18] sm:$0xff] %v268
        // Predicated region
        $region41: #{tpu_custom_call.1} parent=31 // pred_check
          %p273 = pneg %p205
        $region42: #{tpu_custom_call.1} parent=31 // pred_check_branch
          %275 = sbr.rel (%p273) target = $region44
        $region43: #{tpu_custom_call.1} parent=31 // pred_region
          %v276 = vld [vmem:[#allocation2] sm:$0xff]
          %v277 = vld [vmem:[#allocation2 + $0x8] sm:$0xff]
          %v278 = vld [vmem:[#allocation2 + $0x10] sm:$0xff]
          %v279 = vld [vmem:[#allocation2 + $0x18] sm:$0xff]
          %280 = vadd.xlane.f32.xlu0 %v276
          %v281 = vpop.xlane.xlu0 %280
          %282 = vadd.xlane.f32.xlu0 %v277
          %v283 = vpop.xlane.xlu0 %282
          %284 = vadd.xlane.f32.xlu0 %v278
          %v285 = vpop.xlane.xlu0 %284
          %286 = vadd.xlane.f32.xlu0 %v279
          %v287 = vpop.xlane.xlu0 %286
          %v288 = vmul.f32 %v281, 0.00390625
          %v289 = vmul.f32 %v283, 0.00390625
          %v290 = vmul.f32 %v285, 0.00390625
          %v291 = vmul.f32 %v287, 0.00390625
          %v292 = vld [vmem:[#allocation3] sm:$0xff]
          %v293 = vld [vmem:[#allocation3 + $0x8] sm:$0xff]
          %v294 = vld [vmem:[#allocation3 + $0x10] sm:$0xff]
          %v295 = vld [vmem:[#allocation3 + $0x18] sm:$0xff]
          %296 = vmax.xlane.f32.xlu0 %v292
          %v297 = vpop.xlane.xlu0 %296
          %298 = vmax.xlane.f32.xlu0 %v293
          %v299 = vpop.xlane.xlu0 %298
          %300 = vmax.xlane.f32.xlu0 %v294
          %v301 = vpop.xlane.xlu0 %300
          %302 = vmax.xlane.f32.xlu0 %v295
          %v303 = vpop.xlane.xlu0 %302
          %v308 = vlaneseq
          %v309 = vand.u32 %v308, 127
          %v310 = vlaneseq
          %v311 = vshrl.u32 %v310, 7
          %v312 = vsub.s32 %v309, %v311
          %v313 = vrot.slane %v288, %v312
          %v314 = vadd.s32 %v309, 4294967288
          %v315 = vlaneseq
          %v316 = vshrl.u32 %v315, 7
          %v317 = vsub.s32 %v314, %v316
          %v318 = vrot.slane %v289, %v317
          %vm319 = vcmask 130112
          %v320 = vsel %vm319, %v318, %v313
          %v321 = vadd.s32 %v309, 4294967280
          %v322 = vlaneseq
          %v323 = vshrl.u32 %v322, 7
          %v324 = vsub.s32 %v321, %v323
          %v325 = vrot.slane %v290, %v324
          %vm326 = vcmask 195712
          %v327 = vsel %vm326, %v325, %v320
          %v328 = vadd.s32 %v309, 4294967272
          %v329 = vlaneseq
          %v330 = vshrl.u32 %v329, 7
          %v331 = vsub.s32 %v328, %v330
          %v332 = vrot.slane %v291, %v331
          %vm333 = vcmask 261312
          %v334 = vsel %vm333, %v332, %v327
          %v340 = vlaneseq
          %v341 = vshrl.u32 %v340, 7
          %v342 = vsub.s32 %v309, %v341
          %v343 = vrot.slane %v297, %v342
          %v344 = vlaneseq
          %v345 = vshrl.u32 %v344, 7
          %v346 = vsub.s32 %v314, %v345
          %v347 = vrot.slane %v299, %v346
          %v348 = vsel %vm319, %v347, %v343
          %v349 = vlaneseq
          %v350 = vshrl.u32 %v349, 7
          %v351 = vsub.s32 %v321, %v350
          %v352 = vrot.slane %v301, %v351
          %v353 = vsel %vm326, %v352, %v348
          %v354 = vlaneseq
          %v355 = vshrl.u32 %v354, 7
          %v356 = vsub.s32 %v328, %v355
          %v357 = vrot.slane %v303, %v356
          %v358 = vsel %vm333, %v357, %v353
          %vm360 = vcmask 1040384
          %v361 = vsel %vm360, %v334, %v358
          %v362 = vld [vmem:[%s1] sm:$0xff]
          %v363 = vld [vmem:[%s1 + $0x8] sm:$0xff]
          %v364 = vld [vmem:[%s1 + $0x10] sm:$0xff]
          %v365 = vld [vmem:[%s1 + $0x18] sm:$0xff]
          %vm366 = vcmask 261120
          %v368 = vsel %vm366, %v361, 0
          %370 = vmatprep.subr.mxu0 0.0
          %371 = vmatpush1.msra.mxu0 %v362
          %372 = vmatprep.subr.mxu0 0.0
          %373 = vmatpush1.msra.mxu0 %v363
          %374 = vmatprep.subr.mxu0 0.0
          %375 = vmatpush1.msra.mxu0 %v364
          %376 = vmatprep.subr.mxu0 0.0
          %377 = vmatpush1.msra.mxu0 %v365
          %378 = vmatprep.subr.mxu0 0.0
          %379 = vmatpush1.msra.mxu0 0.0
          %380 = vmatprep.subr.mxu0 0.0
          %381 = vmatpush1.msra.mxu0 0.0
          %382 = vmatprep.subr.mxu0 0.0
          %383 = vmatpush1.msra.mxu0 0.0
          %384 = vmatprep.subr.mxu0 0.0
          %385 = vmatpush1.msra.mxu0 0.0
          %386 = vmatprep.subr.mxu0 0.0
          %387 = vmatpush1.msra.mxu0 0.0
          %388 = vmatprep.subr.mxu0 0.0
          %389 = vmatpush1.msra.mxu0 0.0
          %390 = vmatprep.subr.mxu0 0.0
          %391 = vmatpush1.msra.mxu0 0.0
          %392 = vmatprep.subr.mxu0 0.0
          %393 = vmatpush1.msra.mxu0 0.0
          %394 = vmatprep.subr.mxu0 0.0
          %395 = vmatpush1.msra.mxu0 0.0
          %396 = vmatprep.subr.mxu0 0.0
          %397 = vmatpush1.msra.mxu0 0.0
          %398 = vmatprep.subr.mxu0 0.0
          %399 = vmatpush1.msra.mxu0 0.0
          %400 = vmatprep.subr.mxu0 0.0
          %401 = vmatpush1.msra.mxu0 0.0
          %402 = vmatprep.subr.mxu0 0.0
          %403 = vmatpush1.msra.mxu0 0.0
          %404 = vmatprep.subr.mxu0 0.0
          %405 = vmatpush1.msra.mxu0 0.0
          %406 = vmatprep.subr.mxu0 0.0
          %407 = vmatpush1.msra.mxu0 0.0
          %408 = vmatprep.subr.mxu0 0.0
          %409 = vmatpush1.msra.mxu0 0.0
          %410 = vmatprep.subr.mxu0 0.0
          %411 = vmatpush1.msra.mxu0 0.0
          %412 = vmatprep.subr.mxu0 0.0
          %413 = vmatpush1.msra.mxu0 0.0
          %414 = vmatprep.subr.mxu0 0.0
          %415 = vmatpush1.msra.mxu0 0.0
          %416 = vmatprep.subr.mxu0 0.0
          %417 = vmatpush1.msra.mxu0 0.0
          %418 = vmatprep.subr.mxu0 0.0
          %419 = vmatpush1.msra.mxu0 0.0
          %420 = vmatprep.subr.mxu0 0.0
          %421 = vmatpush1.msra.mxu0 0.0
          %422 = vmatprep.subr.mxu0 0.0
          %423 = vmatpush1.msra.mxu0 0.0
          %424 = vmatprep.subr.mxu0 0.0
          %425 = vmatpush1.msra.mxu0 0.0
          %426 = vmatprep.subr.mxu0 0.0
          %427 = vmatpush1.msra.mxu0 0.0
          %428 = vmatprep.subr.mxu0 0.0
          %429 = vmatpush1.msra.mxu0 0.0
          %430 = vmatprep.subr.mxu0 0.0
          %431 = vmatpush1.msra.mxu0 0.0
          %432 = vmatprep.subr.mxu0 0.0
          %433 = vmatpush1.msra.mxu0 0.0
          %434 = vmatprep.mubr.f32.mxu0 0.0
          %435 = vmatmul.mubr.f32.gmra.mrb[0].mxu0 %v368
          %v436 = vpop.f32.mrb[0].mxu0
          %v437 = vadd.f32 0.0, %v436
          %v438 = vpop.f32.mrb[0].mxu0
          %439 = vdwg.mxu0
          %v440 = vmax.f32 %v437, 0.0
          %v441 = vld [vmem:[%s2] sm:$0xff]
          %vm442 = vcmask 64512
          %v444 = vsel %vm442, %v440, 0
          %446 = vmatprep.subr.mxu0 0.0
          %447 = vmatpush1.msra.mxu0 %v441
          %448 = vmatprep.subr.mxu0 0.0
          %449 = vmatpush1.msra.mxu0 0.0
          %450 = vmatprep.subr.mxu0 0.0
          %451 = vmatpush1.msra.mxu0 0.0
          %452 = vmatprep.subr.mxu0 0.0
          %453 = vmatpush1.msra.mxu0 0.0
          %454 = vmatprep.subr.mxu0 0.0
          %455 = vmatpush1.msra.mxu0 0.0
          %456 = vmatprep.subr.mxu0 0.0
          %457 = vmatpush1.msra.mxu0 0.0
          %458 = vmatprep.subr.mxu0 0.0
          %459 = vmatpush1.msra.mxu0 0.0
          %460 = vmatprep.subr.mxu0 0.0
          %461 = vmatpush1.msra.mxu0 0.0
          %462 = vmatprep.subr.mxu0 0.0
          %463 = vmatpush1.msra.mxu0 0.0
          %464 = vmatprep.subr.mxu0 0.0
          %465 = vmatpush1.msra.mxu0 0.0
          %466 = vmatprep.subr.mxu0 0.0
          %467 = vmatpush1.msra.mxu0 0.0
          %468 = vmatprep.subr.mxu0 0.0
          %469 = vmatpush1.msra.mxu0 0.0
          %470 = vmatprep.subr.mxu0 0.0
          %471 = vmatpush1.msra.mxu0 0.0
          %472 = vmatprep.subr.mxu0 0.0
          %473 = vmatpush1.msra.mxu0 0.0
          %474 = vmatprep.subr.mxu0 0.0
          %475 = vmatpush1.msra.mxu0 0.0
          %476 = vmatprep.subr.mxu0 0.0
          %477 = vmatpush1.msra.mxu0 0.0
          %478 = vmatprep.subr.mxu0 0.0
          %479 = vmatpush1.msra.mxu0 0.0
          %480 = vmatprep.subr.mxu0 0.0
          %481 = vmatpush1.msra.mxu0 0.0
          %482 = vmatprep.subr.mxu0 0.0
          %483 = vmatpush1.msra.mxu0 0.0
          %484 = vmatprep.subr.mxu0 0.0
          %485 = vmatpush1.msra.mxu0 0.0
          %486 = vmatprep.subr.mxu0 0.0
          %487 = vmatpush1.msra.mxu0 0.0
          %488 = vmatprep.subr.mxu0 0.0
          %489 = vmatpush1.msra.mxu0 0.0
          %490 = vmatprep.subr.mxu0 0.0
          %491 = vmatpush1.msra.mxu0 0.0
          %492 = vmatprep.subr.mxu0 0.0
          %493 = vmatpush1.msra.mxu0 0.0
          %494 = vmatprep.subr.mxu0 0.0
          %495 = vmatpush1.msra.mxu0 0.0
          %496 = vmatprep.subr.mxu0 0.0
          %497 = vmatpush1.msra.mxu0 0.0
          %498 = vmatprep.subr.mxu0 0.0
          %499 = vmatpush1.msra.mxu0 0.0
          %500 = vmatprep.subr.mxu0 0.0
          %501 = vmatpush1.msra.mxu0 0.0
          %502 = vmatprep.subr.mxu0 0.0
          %503 = vmatpush1.msra.mxu0 0.0
          %504 = vmatprep.subr.mxu0 0.0
          %505 = vmatpush1.msra.mxu0 0.0
          %506 = vmatprep.subr.mxu0 0.0
          %507 = vmatpush1.msra.mxu0 0.0
          %508 = vmatprep.subr.mxu0 0.0
          %509 = vmatpush1.msra.mxu0 0.0
          %510 = vmatprep.mubr.f32.mxu0 0.0
          %511 = vmatmul.mubr.f32.gmra.mrb[0].mxu0 %v444
          %v512 = vpop.f32.mrb[0].mxu0
          %v513 = vadd.f32 0.0, %v512
          %v514 = vpop.f32.mrb[0].mxu0
          %515 = vdwg.mxu0
          %v517 = vrot.slane %v513, 1
          %v519 = vadd.f32 %v513, %v517
          %v520 = vmax.f32 %v519, 0.0
          %vm521 = vcmask 253952
          %522 = vst.msk [vmem:[%s203] sm:$0x1] %vm521, %v520
        $region44: #{tpu_custom_call.1} parent=31 // pred_fallthru
          _
        %s523 = sand.u32 %s110, 1
        %s524 = scalar_lea.sflag [#allocation6], %s523
        %s525 = sand.u32 %s110, 1
        %s526 = scalar_lea.vmem [#allocation7], %s525
        // Predicated region
        $region45: #{tpu_custom_call.1} parent=31 // pred_check
          %p527 = pneg %p120
        $region46: #{tpu_custom_call.1} parent=31 // pred_check_branch
          %529 = sbr.rel (%p527) target = $region48
        $region47: #{tpu_custom_call.1} parent=31 // pred_region
          %s531 = ssub.s32 16, 16
          %532 = vsyncadd %s524, %s531
          %s533 = smul.addr %s24, 16
          %s534 = scalar_lea.hbm %s3, %s533
          %s536 = sshll.u32 %s526, 4
          %s537 = int_to_ptr.vmem [resolvable:$true] %s536
          %539 = dma.vmem_to_hbm [thread:$0]  %s537, 16, %s534, %s524
        $region48: #{tpu_custom_call.1} parent=31 // pred_fallthru
          _
      $region32: #{tpu_custom_call.1} parent=5 // pred_fallthru
        _
      %p540 = scmp.le.s32.totalorder 2, %s15
      // Predicated region
      $region49: #{tpu_custom_call.1} parent=5 // pred_check
        %p541 = pneg %p540
      $region50: #{tpu_custom_call.1} parent=5 // pred_check_branch
        %543 = sbr.rel (%p541) target = $region52
      $region51: #{tpu_custom_call.1} parent=5 // pred_region
        %s544 = ssub.s32 %s15, 2
        // Predicated region
        $region53: #{tpu_custom_call.1} parent=51 // pred_check
          %p545 = pneg %p126
        $region54: #{tpu_custom_call.1} parent=51 // pred_check_branch
          %547 = sbr.rel (%p545) target = $region56
        $region55: #{tpu_custom_call.1} parent=51 // pred_region
          %s548 = sand.u32 %s111, 1
          %s549 = scalar_lea.sflag [#allocation6], %s548
          %s550 = sand.u32 %s111, 1
          %s551 = scalar_lea.vmem [#allocation7], %s550
          %552 = dma.done %s549, 16
        $region56: #{tpu_custom_call.1} parent=51 // pred_fallthru
          _
      $region52: #{tpu_custom_call.1} parent=5 // pred_fallthru
        _
    $region6: #{tpu_custom_call.1} parent=1 // loop_footer
      %s19 = sadd.s32 1, %s15
    $region7: #{tpu_custom_call.1} parent=1 // loop_footer_branch
      %14 = sbr.rel target = $region3
    $region8: #{tpu_custom_call.1} parent=1 // loop_exit
      _
    %553 = vsyncpa [#allocation5], 1
    %s554 = scalar_lea.sflag [#allocation5], 1
    %555 = vsyncpa %s554, 1
    %556 = vsyncpa [#allocation6], 1
    %s557 = scalar_lea.sflag [#allocation6], 1
    %558 = vsyncpa %s557, 1

</llo_original>
